<compile_context>
chip_gen: v7x
topology: tpu7x:2x2x1
jax: 0.10.0
libtpu: 0.0.40
codegen_flags: <defaults>
</compile_context>

<pallas_src>
import jax
import jax.numpy as jnp
from jax.experimental import pallas as pl
from jax.experimental.pallas import tpu as pltpu

N_EMBED = 32
NUM_EXPERTS = 4
TOP_K = 2
BATCH = 2
SEQ = 8
HIDDEN = 4 * N_EMBED                 # per-expert hidden width (128)
EH = NUM_EXPERTS * HIDDEN            # stacked hidden width (512)
ROUTER_PAD = 128                     # router/bias columns get their own 128-lane tile
W1R_COLS = EH + ROUTER_PAD           # 640 fused width for both big matmuls


def sparse_moe_kernel(x_ref, noise_ref, w1r_ref, b1r_ref, gsel_ref, w2b_ref, out_ref):
    E = NUM_EXPERTS
    x = x_ref[...]                                  # (TN, C)  f32 activations
    noise = noise_ref[...]                          # (TN, E)  f32 precomputed N(0,1)

    # Weights arrive as bf16 (halves HBM traffic, the dominant byte stream);
    # upcast in-register and keep f32 MXU accumulation so numerics match the
    # reference run on identically quantized weights.
    w1r = w1r_ref[...].astype(jnp.float32)          # (C, 640)
    b1r = b1r_ref[...].astype(jnp.float32)          # (1, 640)
    gsel = gsel_ref[...].astype(jnp.float32)        # (E, 640)
    w2b = w2b_ref[...].astype(jnp.float32)          # (640, C)

    # --- fused matmul #1: expert W1 (lanes 0:EH) + router wr|wn (lanes EH:EH+2E)
    hz = jnp.dot(x, w1r, preferred_element_type=jnp.float32) + b1r     # (TN, 640)

    # ---------------- NoisyTopkRouter ---------------------------------------
    logits = hz[:, EH:EH + E]
    noise_logits = hz[:, EH + E:EH + 2 * E]
    # softplus with PyTorch-style threshold (x > 20 -> x) for stability
    sp = jnp.where(noise_logits > 20.0, noise_logits,
                   jnp.log1p(jnp.exp(jnp.minimum(noise_logits, 20.0))))
    noisy = logits + noise * sp                     # (TN, E)

    n, e = noisy.shape
    col_ids = jax.lax.broadcasted_iota(jnp.int32, (n, e), 1)
    neg_inf = jnp.float32(-jnp.inf)

    # Iterative top-k selection (static TOP_K). Router math lands on VPU/XLU/EUP
    # which have slack under the MXU work -- do not "parallelize" further.
    selected = jnp.zeros((n, e), dtype=jnp.bool_)
    work = noisy
    for _ in range(TOP_K):
        mx = jnp.max(work, axis=-1, keepdims=True)
        is_max = work == mx
        first_idx = jnp.min(jnp.where(is_max, col_ids, e), axis=-1, keepdims=True)
        onehot = col_ids == first_idx
        selected = jnp.logical_or(selected, onehot)
        work = jnp.where(onehot, neg_inf, work)

    # Sparse softmax: non-selected -> -inf -> exactly 0 after softmax.
    # Each row has >= TOP_K finite entries, so zero-padded rows stay NaN-free.
    sparse_logits = jnp.where(selected, noisy, neg_inf)
    m = jnp.max(sparse_logits, axis=-1, keepdims=True)
    p = jnp.exp(sparse_logits - m)
    gates = p / jnp.sum(p, axis=-1, keepdims=True)                      # (TN, E)

    # ---------------- Experts: one stacked MXU matmul ------------------------
    # Fused LHS in the same 640-lane layout (no in-kernel concat):
    #   lanes    0:EH    -> gate_e * relu(h_e)   (gated expert hidden)
    #   lanes   EH:EH+E  -> gates                (multiplies the b2 rows of w2b)
    #   lanes EH+E:640   -> 0                    (zero rows of w2b)
    lane = jax.lax.broadcasted_iota(jnp.int32, hz.shape, 1)
    h_full = jnp.where(lane < EH, jnp.maximum(hz, 0.0), 1.0)            # (TN, 640)
    gate_full = jnp.dot(gates, gsel, preferred_element_type=jnp.float32)  # (TN, 640)

    # Dropout(0.1) -> identity (eval-mode forward).
    out = jnp.dot(h_full * gate_full, w2b, preferred_element_type=jnp.float32)
    out_ref[...] = out                                                   # (TN, C)


def pack_params(params, weights_dtype=jnp.bfloat16):
    """One-time (init-time) weight packing -- keep OUT of the per-call path.

    Lane-dense 2-D layouts; router / bias / gate columns live in a dedicated
    128-lane tile so the big slices in the kernel are tile-aligned:
      w1r  (C, 640)  = [ W1 stacked over experts | wr | wn | 0 ]
      b1r  (1, 640)  = [ b1 stacked              | br | bn | 0 ]
      gsel (E, 640)  = [ block-diag ones (gate broadcast) | I_E | 0 ]
      w2b  (640, C)  = [ W2 stacked ; b2 ; 0 ]   (b2 folded into the matmul)
    """
    C, E, H = N_EMBED, NUM_EXPERTS, HIDDEN
    f32 = jnp.float32

    w1s = jnp.transpose(params["w1"], (1, 0, 2)).reshape(C, E * H)       # (C, EH)
    wr_wn = jnp.concatenate([params["wr"], params["wn"]], axis=1)        # (C, 2E)
    w1r = jnp.concatenate(
        [w1s, wr_wn, jnp.zeros((C, ROUTER_PAD - 2 * E), f32)], axis=1)   # (C, 640)

    b1s = params["b1"].reshape(1, E * H)
    br_bn = jnp.concatenate([params["br"], params["bn"]], axis=1)        # (1, 2E)
    b1r = jnp.concatenate(
        [b1s, br_bn, jnp.zeros((1, ROUTER_PAD - 2 * E), f32)], axis=1)   # (1, 640)

    sel = jnp.kron(jnp.eye(E, dtype=f32), jnp.ones((1, H), f32))         # (E, EH)
    gsel = jnp.concatenate(
        [sel, jnp.eye(E, dtype=f32), jnp.zeros((E, ROUTER_PAD - E), f32)], axis=1)

    w2s = params["w2"].reshape(E * H, C)                                  # (EH, C)
    w2b = jnp.concatenate(
        [w2s, params["b2"], jnp.zeros((ROUTER_PAD - E, C), f32)], axis=0)  # (640, C)

    return {
        "w1r": w1r.astype(weights_dtype),
        "b1r": b1r.astype(weights_dtype),
        "gsel": gsel.astype(weights_dtype),   # 0/1 entries are exact in bf16
        "w2b": w2b.astype(weights_dtype),
    }


def sparse_moe(x, noise, packed, tile_n=None):
    B, T, C = x.shape
    E = NUM_EXPERTS
    N = B * T
    x_flat = x.reshape(N, C).astype(jnp.float32)
    noise = noise.astype(jnp.float32)

    if tile_n is None:
        # v6e/v7x: big tiles amortize the ~0.35us/grid-step overhead (cap 512).
        # v5e: pass tile_n=128..256 (one MXU pass already full).
        # v7x megacore: pick tile_n so the grid has >=2 (even) steps when N allows.
        tile_n = min(-(-N // 8) * 8, 512)
    n_pad = -(-N // tile_n) * tile_n
    if n_pad != N:
        # Zero padding keeps the router NaN-free; padded rows are sliced off below.
        x_flat = jnp.pad(x_flat, ((0, n_pad - N), (0, 0)))
        noise = jnp.pad(noise, ((0, n_pad - N), (0, 0)))

    out = pl.pallas_call(
        sparse_moe_kernel,
        out_shape=jax.ShapeDtypeStruct((n_pad, C), jnp.float32),
        grid=(n_pad // tile_n,),
        in_specs=[
            pl.BlockSpec((tile_n, C), lambda i: (i, 0)),        # x tokens
            pl.BlockSpec((tile_n, E), lambda i: (i, 0)),        # noise
            # Weight blocks are grid-step invariant (index_map -> (0,0)): the
            # pipeline fetches each once and reuses the same VMEM buffer.
            pl.BlockSpec((C, W1R_COLS), lambda i: (0, 0)),      # [W1 | wr|wn]  bf16
            pl.BlockSpec((1, W1R_COLS), lambda i: (0, 0)),      # [b1 | br|bn]  bf16
            pl.BlockSpec((E, W1R_COLS), lambda i: (0, 0)),      # [gate-select | I_E]
            pl.BlockSpec((W1R_COLS, C), lambda i: (0, 0)),      # [W2 ; b2]     bf16
        ],
        out_specs=pl.BlockSpec((tile_n, C), lambda i: (i, 0)),
        compiler_params=pltpu.CompilerParams(
            dimension_semantics=("parallel",)),
    )(x_flat, noise, packed["w1r"], packed["b1r"], packed["gsel"], packed["w2b"])
    # TODO(synk): if this block is fused into a larger model at scale, emit a
    # 128-lane-padded output slab (C=32 stores are masked vst.msk) and slice outside.
    return out[:N].reshape(B, T, C)


def sparse_moe_reference(x, noise, params):
    """Pure-JAX reference (original per-expert formulation, no Pallas)."""
    B, T, C = x.shape
    xf = x.reshape(-1, C)
    logits = xf @ params["wr"] + params["br"]
    nlog = xf @ params["wn"] + params["bn"]
    sp = jnp.where(nlog > 20.0, nlog, jnp.log1p(jnp.exp(jnp.minimum(nlog, 20.0))))
    noisy = logits + noise * sp
    n, e = noisy.shape
    col_ids = jnp.arange(e)[None, :].astype(jnp.int32) * jnp.ones((n, 1), jnp.int32)
    sel = jnp.zeros((n, e), bool)
    work = noisy
    for _ in range(TOP_K):
        mx = jnp.max(work, axis=-1, keepdims=True)
        first = jnp.min(jnp.where(work == mx, col_ids, e), axis=-1, keepdims=True)
        oh = col_ids == first
        sel |= oh
        work = jnp.where(oh, -jnp.inf, work)
    sparse = jnp.where(sel, noisy, -jnp.inf)
    gates = jax.nn.softmax(sparse, axis=-1)
    out = jnp.zeros_like(xf)
    for ei in range(NUM_EXPERTS):
        h = jnp.maximum(xf @ params["w1"][ei] + params["b1"][ei], 0.0)
        y = h @ params["w2"][ei] + params["b2"][ei]
        out = out + gates[:, ei:ei + 1] * y
    return out.reshape(B, T, C)


def make_params(key, C=N_EMBED, E=NUM_EXPERTS):
    ks = jax.random.split(key, 10)
    s = 0.1
    return {
        "wr": (jax.random.normal(ks[0], (C, E)) * s).astype(jnp.float32),
        "br": (jax.random.normal(ks[1], (1, E)) * s).astype(jnp.float32),
        "wn": (jax.random.normal(ks[2], (C, E)) * s).astype(jnp.float32),
        "bn": (jax.random.normal(ks[3], (1, E)) * s).astype(jnp.float32),
        "w1": (jax.random.normal(ks[4], (E, C, 4 * C)) * s).astype(jnp.float32),
        "b1": (jax.random.normal(ks[5], (E, 4 * C)) * s).astype(jnp.float32),
        "w2": (jax.random.normal(ks[6], (E, 4 * C, C)) * s).astype(jnp.float32),
        "b2": (jax.random.normal(ks[7], (E, C)) * s).astype(jnp.float32),
    }


if __name__ == "__main__":
    key = jax.random.PRNGKey(0)
    k_par, k_x, k_noise = jax.random.split(key, 3)

    params = make_params(k_par)
    x = jax.random.normal(k_x, (BATCH, SEQ, N_EMBED), dtype=jnp.float32)
    noise = jax.random.normal(k_noise, (BATCH * SEQ, NUM_EXPERTS), dtype=jnp.float32)

    # Pack (and bf16-quantize) weights ONCE at init time -- not per forward call.
    packed = pack_params(params, weights_dtype=jnp.bfloat16)

    moe = jax.jit(sparse_moe)
    out = jax.block_until_ready(moe(x, noise, packed))

    # The reference uses identically bf16-quantized weights (dequantized to f32),
    # so the check isolates kernel numerics from the deliberate bf16 weight
    # storage format recommended by the perf review.
    params_q = jax.tree_util.tree_map(
        lambda a: a.astype(jnp.bfloat16).astype(jnp.float32), params)
    ref = sparse_moe_reference(x, noise, params_q)

    assert out.shape == (BATCH, SEQ, N_EMBED)
    assert jnp.allclose(out, ref, atol=1e-4, rtol=1e-4), "mismatch vs JAX reference"

    print("KERNEL_OK")
</pallas_src>

<mosaic_0001>
module attributes {stable_mosaic.version = 11 : i64} {
  func.func @sparse_moe_kernel(%arg0: i32, %arg1: memref<16x32xf32, #tpu.memory_space<vmem>>, %arg2: memref<16x4xf32, #tpu.memory_space<vmem>>, %arg3: memref<32x640xbf16, #tpu.memory_space<vmem>>, %arg4: memref<1x640xbf16, #tpu.memory_space<vmem>>, %arg5: memref<4x640xbf16, #tpu.memory_space<vmem>>, %arg6: memref<640x32xbf16, #tpu.memory_space<vmem>>, %arg7: memref<16x32xf32, #tpu.memory_space<vmem>>) attributes {dimension_semantics = [#tpu.dimension_semantics<parallel>], iteration_bounds = array<i64: 1>, scalar_prefetch = 0 : i64, scratch_operands = 0 : i64, tpu.core_type = #tpu.core_type<tc>, window_params = [{transform_indices = @transform_0, window_bounds = array<i64: 16, 32>}, {transform_indices = @transform_1, window_bounds = array<i64: 16, 4>}, {pipeline_mode = #tpu.pipeline_mode<synchronous>, transform_indices = @transform_2, window_bounds = array<i64: 32, 640>}, {pipeline_mode = #tpu.pipeline_mode<synchronous>, transform_indices = @transform_3, window_bounds = array<i64: 1, 640>}, {pipeline_mode = #tpu.pipeline_mode<synchronous>, transform_indices = @transform_4, window_bounds = array<i64: 4, 640>}, {pipeline_mode = #tpu.pipeline_mode<synchronous>, transform_indices = @transform_5, window_bounds = array<i64: 640, 32>}, {transform_indices = @transform_6, window_bounds = array<i64: 16, 32>}]} {
    %c0 = arith.constant 0 : index
    %c0_0 = arith.constant 0 : index
    %0 = vector.load %arg1[%c0, %c0_0] : memref<16x32xf32, #tpu.memory_space<vmem>>, vector<16x32xf32>
    %c0_1 = arith.constant 0 : index
    %c0_2 = arith.constant 0 : index
    %1 = vector.load %arg2[%c0_1, %c0_2] : memref<16x4xf32, #tpu.memory_space<vmem>>, vector<16x4xf32>
    %c0_3 = arith.constant 0 : index
    %c0_4 = arith.constant 0 : index
    %2 = vector.load %arg3[%c0_3, %c0_4] : memref<32x640xbf16, #tpu.memory_space<vmem>>, vector<32x640xbf16>
    %3 = arith.extf %2 : vector<32x640xbf16> to vector<32x640xf32>
    %c0_5 = arith.constant 0 : index
    %c0_6 = arith.constant 0 : index
    %4 = vector.load %arg4[%c0_5, %c0_6] : memref<1x640xbf16, #tpu.memory_space<vmem>>, vector<1x640xbf16>
    %5 = arith.extf %4 : vector<1x640xbf16> to vector<1x640xf32>
    %c0_7 = arith.constant 0 : index
    %c0_8 = arith.constant 0 : index
    %6 = vector.load %arg5[%c0_7, %c0_8] : memref<4x640xbf16, #tpu.memory_space<vmem>>, vector<4x640xbf16>
    %7 = arith.extf %6 : vector<4x640xbf16> to vector<4x640xf32>
    %c0_9 = arith.constant 0 : index
    %c0_10 = arith.constant 0 : index
    %8 = vector.load %arg6[%c0_9, %c0_10] : memref<640x32xbf16, #tpu.memory_space<vmem>>, vector<640x32xbf16>
    %9 = arith.extf %8 : vector<640x32xbf16> to vector<640x32xf32>
    %cst = arith.constant dense<0.000000e+00> : vector<16x640xf32>
    %10 = tpu.matmul %0, %3, %cst {dimension_numbers = #tpu.dot_dimension_numbers<[1], [0], [0], [1], [0, 0, 1, 1], [], []>} : vector<16x32xf32>, vector<32x640xf32>, vector<16x640xf32> -> vector<16x640xf32>
    %11 = vector.broadcast %5 : vector<1x640xf32> to vector<16x640xf32>
    %12 = arith.addf %10, %11 : vector<16x640xf32>
    %13 = vector.extract_strided_slice %12 {offsets = [0, 512], sizes = [16, 4], strides = [1, 1]} : vector<16x640xf32> to vector<16x4xf32>
    %14 = vector.extract_strided_slice %12 {offsets = [0, 516], sizes = [16, 4], strides = [1, 1]} : vector<16x640xf32> to vector<16x4xf32>
    %cst_11 = arith.constant 2.000000e+01 : f32
    %15 = vector.broadcast %cst_11 : f32 to vector<16x4xf32>
    %16 = arith.cmpf ogt, %14, %15 : vector<16x4xf32>
    %cst_12 = arith.constant 2.000000e+01 : f32
    %17 = vector.broadcast %cst_12 : f32 to vector<16x4xf32>
    %18 = arith.minimumf %14, %17 : vector<16x4xf32>
    %19 = math.exp %18 : vector<16x4xf32>
    %20 = math.log1p %19 : vector<16x4xf32>
    %21 = arith.select %16, %14, %20 : vector<16x4xi1>, vector<16x4xf32>
    %22 = arith.mulf %1, %21 : vector<16x4xf32>
    %23 = arith.addf %13, %22 : vector<16x4xf32>
    %24 = tpu.iota {dimensions = array<i32: 1>} : vector<16x4xi32>
    %false = arith.constant false
    %25 = vector.broadcast %false : i1 to vector<16x4xi1>
    %cst_13 = arith.constant dense<0xFF800000> : vector<16xf32>
    %26 = vector.multi_reduction <maximumf>, %23, %cst_13 [1] : vector<16x4xf32> to vector<16xf32>
    %27 = vector.shape_cast %26 : vector<16xf32> to vector<16x1xf32>
    %28 = vector.broadcast %27 : vector<16x1xf32> to vector<16x4xf32>
    %29 = arith.cmpf oeq, %23, %28 : vector<16x4xf32>
    %c4_i32 = arith.constant 4 : i32
    %30 = vector.broadcast %c4_i32 : i32 to vector<16x4xi32>
    %31 = arith.select %29, %24, %30 : vector<16x4xi1>, vector<16x4xi32>
    %cst_14 = arith.constant dense<2147483647> : vector<16xi32>
    %32 = vector.multi_reduction <minsi>, %31, %cst_14 [1] : vector<16x4xi32> to vector<16xi32>
    %33 = vector.shape_cast %32 : vector<16xi32> to vector<16x1xi32>
    %34 = vector.broadcast %33 : vector<16x1xi32> to vector<16x4xi32>
    %35 = arith.cmpi eq, %24, %34 : vector<16x4xi32>
    %36 = arith.ori %25, %35 : vector<16x4xi1>
    %cst_15 = arith.constant 0xFF800000 : f32
    %37 = vector.broadcast %cst_15 : f32 to vector<16x4xf32>
    %38 = arith.select %35, %37, %23 : vector<16x4xi1>, vector<16x4xf32>
    %cst_16 = arith.constant dense<0xFF800000> : vector<16xf32>
    %39 = vector.multi_reduction <maximumf>, %38, %cst_16 [1] : vector<16x4xf32> to vector<16xf32>
    %40 = vector.shape_cast %39 : vector<16xf32> to vector<16x1xf32>
    %41 = vector.broadcast %40 : vector<16x1xf32> to vector<16x4xf32>
    %42 = arith.cmpf oeq, %38, %41 : vector<16x4xf32>
    %c4_i32_17 = arith.constant 4 : i32
    %43 = vector.broadcast %c4_i32_17 : i32 to vector<16x4xi32>
    %44 = arith.select %42, %24, %43 : vector<16x4xi1>, vector<16x4xi32>
    %cst_18 = arith.constant dense<2147483647> : vector<16xi32>
    %45 = vector.multi_reduction <minsi>, %44, %cst_18 [1] : vector<16x4xi32> to vector<16xi32>
    %46 = vector.shape_cast %45 : vector<16xi32> to vector<16x1xi32>
    %47 = vector.broadcast %46 : vector<16x1xi32> to vector<16x4xi32>
    %48 = arith.cmpi eq, %24, %47 : vector<16x4xi32>
    %49 = arith.ori %36, %48 : vector<16x4xi1>
    %cst_19 = arith.constant 0xFF800000 : f32
    %50 = vector.broadcast %cst_19 : f32 to vector<16x4xf32>
    %51 = arith.select %49, %23, %50 : vector<16x4xi1>, vector<16x4xf32>
    %cst_20 = arith.constant dense<0xFF800000> : vector<16xf32>
    %52 = vector.multi_reduction <maximumf>, %51, %cst_20 [1] : vector<16x4xf32> to vector<16xf32>
    %53 = vector.shape_cast %52 : vector<16xf32> to vector<16x1xf32>
    %54 = vector.broadcast %53 : vector<16x1xf32> to vector<16x4xf32>
    %55 = arith.subf %51, %54 : vector<16x4xf32>
    %56 = math.exp %55 : vector<16x4xf32>
    %cst_21 = arith.constant dense<0.000000e+00> : vector<16xf32>
    %57 = vector.multi_reduction <add>, %56, %cst_21 [1] : vector<16x4xf32> to vector<16xf32>
    %58 = vector.shape_cast %57 : vector<16xf32> to vector<16x1xf32>
    %59 = vector.broadcast %58 : vector<16x1xf32> to vector<16x4xf32>
    %60 = arith.divf %56, %59 : vector<16x4xf32>
    %61 = tpu.iota {dimensions = array<i32: 1>} : vector<16x640xi32>
    %c512_i32 = arith.constant 512 : i32
    %62 = vector.broadcast %c512_i32 : i32 to vector<16x640xi32>
    %63 = arith.cmpi slt, %61, %62 : vector<16x640xi32>
    %cst_22 = arith.constant 0.000000e+00 : f32
    %64 = vector.broadcast %cst_22 : f32 to vector<16x640xf32>
    %65 = arith.maximumf %12, %64 : vector<16x640xf32>
    %cst_23 = arith.constant 1.000000e+00 : f32
    %66 = vector.broadcast %cst_23 : f32 to vector<16x640xf32>
    %67 = arith.select %63, %65, %66 : vector<16x640xi1>, vector<16x640xf32>
    %cst_24 = arith.constant dense<0.000000e+00> : vector<16x640xf32>
    %68 = tpu.matmul %60, %7, %cst_24 {dimension_numbers = #tpu.dot_dimension_numbers<[1], [0], [0], [1], [0, 0, 1, 1], [], []>} : vector<16x4xf32>, vector<4x640xf32>, vector<16x640xf32> -> vector<16x640xf32>
    %69 = arith.mulf %67, %68 : vector<16x640xf32>
    %cst_25 = arith.constant dense<0.000000e+00> : vector<16x32xf32>
    %70 = tpu.matmul %69, %9, %cst_25 {dimension_numbers = #tpu.dot_dimension_numbers<[1], [0], [0], [1], [0, 0, 1, 1], [], []>} : vector<16x640xf32>, vector<640x32xf32>, vector<16x32xf32> -> vector<16x32xf32>
    %c0_26 = arith.constant 0 : index
    %c0_27 = arith.constant 0 : index
    %71 = vector.load %arg7[%c0_26, %c0_27] : memref<16x32xf32, #tpu.memory_space<vmem>>, vector<16x32xf32>
    tpu.vector_store %arg7[%c0_26, %c0_27], %70 {strides = array<i32>} : memref<16x32xf32, #tpu.memory_space<vmem>>, vector<16x32xf32>,
    return
  }
  func.func @transform_0(%arg0: i32) -> (i32, i32) {
    %c0_i32 = arith.constant 0 : i32
    %c0_i32_0 = arith.constant 0 : i32
    return %arg0, %c0_i32 : i32, i32
  }
  func.func @transform_1(%arg0: i32) -> (i32, i32) {
    %c0_i32 = arith.constant 0 : i32
    %c0_i32_0 = arith.constant 0 : i32
    return %arg0, %c0_i32 : i32, i32
  }
  func.func @transform_2(%arg0: i32) -> (i32, i32) {
    %c0_i32 = arith.constant 0 : i32
    %c0_i32_0 = arith.constant 0 : i32
    %c0_i32_1 = arith.constant 0 : i32
    return %c0_i32, %c0_i32_0 : i32, i32
  }
  func.func @transform_3(%arg0: i32) -> (i32, i32) {
    %c0_i32 = arith.constant 0 : i32
    %c0_i32_0 = arith.constant 0 : i32
    %c0_i32_1 = arith.constant 0 : i32
    return %c0_i32, %c0_i32_0 : i32, i32
  }
  func.func @transform_4(%arg0: i32) -> (i32, i32) {
    %c0_i32 = arith.constant 0 : i32
    %c0_i32_0 = arith.constant 0 : i32
    %c0_i32_1 = arith.constant 0 : i32
    return %c0_i32, %c0_i32_0 : i32, i32
  }
  func.func @transform_5(%arg0: i32) -> (i32, i32) {
    %c0_i32 = arith.constant 0 : i32
    %c0_i32_0 = arith.constant 0 : i32
    %c0_i32_1 = arith.constant 0 : i32
    return %c0_i32, %c0_i32_0 : i32, i32
  }
  func.func @transform_6(%arg0: i32) -> (i32, i32) {
    %c0_i32 = arith.constant 0 : i32
    %c0_i32_0 = arith.constant 0 : i32
    return %arg0, %c0_i32 : i32, i32
  }
}

</mosaic_0001>

<llo_original>
// kernel: sparse_moe.1
$region0: #{sparse_moe.1}
  #allocation0 [shape = 'u32[]', space=smem, size = 0x4, offset = 0x4, fixed_abs, tag = 'smem constant byte address 0x4 - core index']
  #allocation1 [shape = 'u32[144,128]{1,0:T(1,128)}', space=vmem, size = 0x12000, scoped, tag = 'internal scratch']
  %s0 = inlined_call_operand.vmem [shape: f32[16,32], index: 0, kind: input, shape index: {}]
  %s1 = inlined_call_operand.vmem [shape: f32[16,4], index: 1, kind: input, shape index: {}]
  %s2 = inlined_call_operand.vmem [shape: bf16[32,640], index: 2, kind: input, shape index: {}]
  %s3 = inlined_call_operand.vmem [shape: bf16[1,640], index: 3, kind: input, shape index: {}]
  %s4 = inlined_call_operand.vmem [shape: bf16[4,640], index: 4, kind: input, shape index: {}]
  %s5 = inlined_call_operand.vmem [shape: bf16[640,32], index: 5, kind: input, shape index: {}]
  %s6 = inlined_call_operand.hbm [shape: f32[16,32], index: 6, kind: output, shape index: {}]
  %s7 = sld [smem:[#allocation0]]
  $region34: #{sparse_moe.1} parent=0
    _
  %s9 = ssub.s32 1, %s7
  %s10 = scalar_select 0, %s9, %s7
  $region1: #{sparse_moe.1} parent=0
    #allocation2 [shape = 'u8[8192]{0}', space=vmem, size = 0x2000, scoped, tag = 'output window, operand 0, single buffered']
    #allocation3 [shape = 's32[1]{0}', space=sflag, size = 0x4, scoped, tag = 'scoped memory for sparse_moe.1']
    %11 = vsyncpa [#allocation3], 0
    // Predicated region
    $region2: #{sparse_moe.1} parent=1 // pred_check
      _
    $region3: #{sparse_moe.1} parent=1 // pred_check_branch
      %13 = sbr.rel (0) target = $region5
    $region4: #{sparse_moe.1} parent=1 // pred_region
      _
    $region5: #{sparse_moe.1} parent=1 // pred_fallthru
      _
    // Predicated region
    $region6: #{sparse_moe.1} parent=1 // pred_check
      _
    $region7: #{sparse_moe.1} parent=1 // pred_check_branch
      %15 = sbr.rel (0) target = $region9
    $region8: #{sparse_moe.1} parent=1 // pred_region
      _
    $region9: #{sparse_moe.1} parent=1 // pred_fallthru
      _
    // Predicated region
    $region10: #{sparse_moe.1} parent=1 // pred_check
      _
    $region11: #{sparse_moe.1} parent=1 // pred_check_branch
      %17 = sbr.rel (0) target = $region13
    $region12: #{sparse_moe.1} parent=1 // pred_region
      _
    $region13: #{sparse_moe.1} parent=1 // pred_fallthru
      _
    // Predicated region
    $region14: #{sparse_moe.1} parent=1 // pred_check
      _
    $region15: #{sparse_moe.1} parent=1 // pred_check_branch
      %19 = sbr.rel (0) target = $region17
    $region16: #{sparse_moe.1} parent=1 // pred_region
      _
    $region17: #{sparse_moe.1} parent=1 // pred_fallthru
      _
    // Predicated region
    $region18: #{sparse_moe.1} parent=1 // pred_check
      _
    $region19: #{sparse_moe.1} parent=1 // pred_check_branch
      %21 = sbr.rel (0) target = $region21
    $region20: #{sparse_moe.1} parent=1 // pred_region
      _
    $region21: #{sparse_moe.1} parent=1 // pred_fallthru
      _
    // Predicated region
    $region22: #{sparse_moe.1} parent=1 // pred_check
      _
    $region23: #{sparse_moe.1} parent=1 // pred_check_branch
      %23 = sbr.rel (0) target = $region25
    $region24: #{sparse_moe.1} parent=1 // pred_region
      _
    $region25: #{sparse_moe.1} parent=1 // pred_fallthru
      _
    %v24 = vld [vmem:[%s0] sm:$0xff]
    %v25 = vld [vmem:[%s0 + $0x8] sm:$0xff]
    %v26 = vld [vmem:[%s1] sm:$0xff]
    %v27 = vld [vmem:[%s1 + $0x8] sm:$0xff]
    %v28 = vld [vmem:[%s2] sm:$0xff]
    %v29 = vld [vmem:[%s2 + $0x8] sm:$0xff]
    %v30 = vld [vmem:[%s2 + $0x10] sm:$0xf]
    %v31 = vld [vmem:[%s2 + $0x14] sm:$0xff]
    %v32 = vld [vmem:[%s2 + $0x1c] sm:$0xff]
    %v33 = vld [vmem:[%s2 + $0x24] sm:$0xf]
    %v34 = vld [vmem:[%s2 + $0x28] sm:$0xff]
    %v35 = vld [vmem:[%s2 + $0x30] sm:$0xff]
    %v36 = vld [vmem:[%s2 + $0x38] sm:$0xf]
    %v37 = vld [vmem:[%s2 + $0x3c] sm:$0xff]
    %v38 = vld [vmem:[%s2 + $0x44] sm:$0xff]
    %v39 = vld [vmem:[%s2 + $0x4c] sm:$0xf]
    %v40 = vunpack.c.l.bf16 %v28
    %v41 = vunpack.c.h.bf16 %v28
    %v42 = vunpack.c.l.bf16 %v29
    %v43 = vunpack.c.h.bf16 %v29
    %v44 = vunpack.c.l.bf16 %v30
    %v45 = vunpack.c.l.bf16 %v31
    %v46 = vunpack.c.h.bf16 %v31
    %v47 = vunpack.c.l.bf16 %v32
    %v48 = vunpack.c.h.bf16 %v32
    %v49 = vunpack.c.l.bf16 %v33
    %v50 = vunpack.c.l.bf16 %v34
    %v51 = vunpack.c.h.bf16 %v34
    %v52 = vunpack.c.l.bf16 %v35
    %v53 = vunpack.c.h.bf16 %v35
    %v54 = vunpack.c.l.bf16 %v36
    %v55 = vunpack.c.l.bf16 %v37
    %v56 = vunpack.c.h.bf16 %v37
    %v57 = vunpack.c.l.bf16 %v38
    %v58 = vunpack.c.h.bf16 %v38
    %v59 = vunpack.c.l.bf16 %v39
    %v60 = vld [vmem:[%s3] sm:$0x1f]
    %v61 = vunpack.c.l.bf16 %v60
    %v62 = vunpack.c.h.bf16 %v60
    %v63 = vld [vmem:[%s4] sm:$0xff]
    %v64 = vld [vmem:[%s4 + $0x8] sm:$0x3]
    %v65 = vunpack.c.l.bf16 %v63
    %v66 = vunpack.c.h.bf16 %v63
    %v67 = vunpack.c.l.bf16 %v64
    %v68 = vld [vmem:[%s5] sm:$0xf]
    %v69 = vld [vmem:[%s5 + $0x4] sm:$0xf]
    %v70 = vld [vmem:[%s5 + $0x8] sm:$0xf]
    %v71 = vld [vmem:[%s5 + $0xc] sm:$0xf]
    %v72 = vld [vmem:[%s5 + $0x10] sm:$0xf]
    %v73 = vld [vmem:[%s5 + $0x14] sm:$0xf]
    %v74 = vld [vmem:[%s5 + $0x18] sm:$0xf]
    %v75 = vld [vmem:[%s5 + $0x1c] sm:$0xf]
    %v76 = vld [vmem:[%s5 + $0x20] sm:$0xf]
    %v77 = vld [vmem:[%s5 + $0x24] sm:$0xf]
    %v78 = vld [vmem:[%s5 + $0x28] sm:$0xf]
    %v79 = vld [vmem:[%s5 + $0x2c] sm:$0xf]
    %v80 = vld [vmem:[%s5 + $0x30] sm:$0xf]
    %v81 = vld [vmem:[%s5 + $0x34] sm:$0xf]
    %v82 = vld [vmem:[%s5 + $0x38] sm:$0xf]
    %v83 = vld [vmem:[%s5 + $0x3c] sm:$0xf]
    %v84 = vld [vmem:[%s5 + $0x40] sm:$0xf]
    %v85 = vld [vmem:[%s5 + $0x44] sm:$0xf]
    %v86 = vld [vmem:[%s5 + $0x48] sm:$0xf]
    %v87 = vld [vmem:[%s5 + $0x4c] sm:$0xf]
    %v88 = vld [vmem:[%s5 + $0x50] sm:$0xf]
    %v89 = vld [vmem:[%s5 + $0x54] sm:$0xf]
    %v90 = vld [vmem:[%s5 + $0x58] sm:$0xf]
    %v91 = vld [vmem:[%s5 + $0x5c] sm:$0xf]
    %v92 = vld [vmem:[%s5 + $0x60] sm:$0xf]
    %v93 = vld [vmem:[%s5 + $0x64] sm:$0xf]
    %v94 = vld [vmem:[%s5 + $0x68] sm:$0xf]
    %v95 = vld [vmem:[%s5 + $0x6c] sm:$0xf]
    %v96 = vld [vmem:[%s5 + $0x70] sm:$0xf]
    %v97 = vld [vmem:[%s5 + $0x74] sm:$0xf]
    %v98 = vld [vmem:[%s5 + $0x78] sm:$0xf]
    %v99 = vld [vmem:[%s5 + $0x7c] sm:$0xf]
    %v100 = vld [vmem:[%s5 + $0x80] sm:$0xf]
    %v101 = vld [vmem:[%s5 + $0x84] sm:$0xf]
    %v102 = vld [vmem:[%s5 + $0x88] sm:$0xf]
    %v103 = vld [vmem:[%s5 + $0x8c] sm:$0xf]
    %v104 = vld [vmem:[%s5 + $0x90] sm:$0xf]
    %v105 = vld [vmem:[%s5 + $0x94] sm:$0xf]
    %v106 = vld [vmem:[%s5 + $0x98] sm:$0xf]
    %v107 = vld [vmem:[%s5 + $0x9c] sm:$0xf]
    %v108 = vld [vmem:[%s5 + $0xa0] sm:$0xf]
    %v109 = vld [vmem:[%s5 + $0xa4] sm:$0xf]
    %v110 = vld [vmem:[%s5 + $0xa8] sm:$0xf]
    %v111 = vld [vmem:[%s5 + $0xac] sm:$0xf]
    %v112 = vld [vmem:[%s5 + $0xb0] sm:$0xf]
    %v113 = vld [vmem:[%s5 + $0xb4] sm:$0xf]
    %v114 = vld [vmem:[%s5 + $0xb8] sm:$0xf]
    %v115 = vld [vmem:[%s5 + $0xbc] sm:$0xf]
    %v116 = vld [vmem:[%s5 + $0xc0] sm:$0xf]
    %v117 = vld [vmem:[%s5 + $0xc4] sm:$0xf]
    %v118 = vld [vmem:[%s5 + $0xc8] sm:$0xf]
    %v119 = vld [vmem:[%s5 + $0xcc] sm:$0xf]
    %v120 = vld [vmem:[%s5 + $0xd0] sm:$0xf]
    %v121 = vld [vmem:[%s5 + $0xd4] sm:$0xf]
    %v122 = vld [vmem:[%s5 + $0xd8] sm:$0xf]
    %v123 = vld [vmem:[%s5 + $0xdc] sm:$0xf]
    %v124 = vld [vmem:[%s5 + $0xe0] sm:$0xf]
    %v125 = vld [vmem:[%s5 + $0xe4] sm:$0xf]
    %v126 = vld [vmem:[%s5 + $0xe8] sm:$0xf]
    %v127 = vld [vmem:[%s5 + $0xec] sm:$0xf]
    %v128 = vld [vmem:[%s5 + $0xf0] sm:$0xf]
    %v129 = vld [vmem:[%s5 + $0xf4] sm:$0xf]
    %v130 = vld [vmem:[%s5 + $0xf8] sm:$0xf]
    %v131 = vld [vmem:[%s5 + $0xfc] sm:$0xf]
    %v132 = vld [vmem:[%s5 + $0x100] sm:$0xf]
    %v133 = vld [vmem:[%s5 + $0x104] sm:$0xf]
    %v134 = vld [vmem:[%s5 + $0x108] sm:$0xf]
    %v135 = vld [vmem:[%s5 + $0x10c] sm:$0xf]
    %v136 = vld [vmem:[%s5 + $0x110] sm:$0xf]
    %v137 = vld [vmem:[%s5 + $0x114] sm:$0xf]
    %v138 = vld [vmem:[%s5 + $0x118] sm:$0xf]
    %v139 = vld [vmem:[%s5 + $0x11c] sm:$0xf]
    %v140 = vld [vmem:[%s5 + $0x120] sm:$0xf]
    %v141 = vld [vmem:[%s5 + $0x124] sm:$0xf]
    %v142 = vld [vmem:[%s5 + $0x128] sm:$0xf]
    %v143 = vld [vmem:[%s5 + $0x12c] sm:$0xf]
    %v144 = vld [vmem:[%s5 + $0x130] sm:$0xf]
    %v145 = vld [vmem:[%s5 + $0x134] sm:$0xf]
    %v146 = vld [vmem:[%s5 + $0x138] sm:$0xf]
    %v147 = vld [vmem:[%s5 + $0x13c] sm:$0xf]
    %v148 = vunpack.c.l.bf16 %v68
    %v149 = vunpack.c.l.bf16 %v69
    %v150 = vunpack.c.l.bf16 %v70
    %v151 = vunpack.c.l.bf16 %v71
    %v152 = vunpack.c.l.bf16 %v72
    %v153 = vunpack.c.l.bf16 %v73
    %v154 = vunpack.c.l.bf16 %v74
    %v155 = vunpack.c.l.bf16 %v75
    %v156 = vunpack.c.l.bf16 %v76
    %v157 = vunpack.c.l.bf16 %v77
    %v158 = vunpack.c.l.bf16 %v78
    %v159 = vunpack.c.l.bf16 %v79
    %v160 = vunpack.c.l.bf16 %v80
    %v161 = vunpack.c.l.bf16 %v81
    %v162 = vunpack.c.l.bf16 %v82
    %v163 = vunpack.c.l.bf16 %v83
    %v164 = vunpack.c.l.bf16 %v84
    %v165 = vunpack.c.l.bf16 %v85
    %v166 = vunpack.c.l.bf16 %v86
    %v167 = vunpack.c.l.bf16 %v87
    %v168 = vunpack.c.l.bf16 %v88
    %v169 = vunpack.c.l.bf16 %v89
    %v170 = vunpack.c.l.bf16 %v90
    %v171 = vunpack.c.l.bf16 %v91
    %v172 = vunpack.c.l.bf16 %v92
    %v173 = vunpack.c.l.bf16 %v93
    %v174 = vunpack.c.l.bf16 %v94
    %v175 = vunpack.c.l.bf16 %v95
    %v176 = vunpack.c.l.bf16 %v96
    %v177 = vunpack.c.l.bf16 %v97
    %v178 = vunpack.c.l.bf16 %v98
    %v179 = vunpack.c.l.bf16 %v99
    %v180 = vunpack.c.l.bf16 %v100
    %v181 = vunpack.c.l.bf16 %v101
    %v182 = vunpack.c.l.bf16 %v102
    %v183 = vunpack.c.l.bf16 %v103
    %v184 = vunpack.c.l.bf16 %v104
    %v185 = vunpack.c.l.bf16 %v105
    %v186 = vunpack.c.l.bf16 %v106
    %v187 = vunpack.c.l.bf16 %v107
    %v188 = vunpack.c.l.bf16 %v108
    %v189 = vunpack.c.l.bf16 %v109
    %v190 = vunpack.c.l.bf16 %v110
    %v191 = vunpack.c.l.bf16 %v111
    %v192 = vunpack.c.l.bf16 %v112
    %v193 = vunpack.c.l.bf16 %v113
    %v194 = vunpack.c.l.bf16 %v114
    %v195 = vunpack.c.l.bf16 %v115
    %v196 = vunpack.c.l.bf16 %v116
    %v197 = vunpack.c.l.bf16 %v117
    %v198 = vunpack.c.l.bf16 %v118
    %v199 = vunpack.c.l.bf16 %v119
    %v200 = vunpack.c.l.bf16 %v120
    %v201 = vunpack.c.l.bf16 %v121
    %v202 = vunpack.c.l.bf16 %v122
    %v203 = vunpack.c.l.bf16 %v123
    %v204 = vunpack.c.l.bf16 %v124
    %v205 = vunpack.c.l.bf16 %v125
    %v206 = vunpack.c.l.bf16 %v126
    %v207 = vunpack.c.l.bf16 %v127
    %v208 = vunpack.c.l.bf16 %v128
    %v209 = vunpack.c.l.bf16 %v129
    %v210 = vunpack.c.l.bf16 %v130
    %v211 = vunpack.c.l.bf16 %v131
    %v212 = vunpack.c.l.bf16 %v132
    %v213 = vunpack.c.l.bf16 %v133
    %v214 = vunpack.c.l.bf16 %v134
    %v215 = vunpack.c.l.bf16 %v135
    %v216 = vunpack.c.l.bf16 %v136
    %v217 = vunpack.c.l.bf16 %v137
    %v218 = vunpack.c.l.bf16 %v138
    %v219 = vunpack.c.l.bf16 %v139
    %v220 = vunpack.c.l.bf16 %v140
    %v221 = vunpack.c.l.bf16 %v141
    %v222 = vunpack.c.l.bf16 %v142
    %v223 = vunpack.c.l.bf16 %v143
    %v224 = vunpack.c.l.bf16 %v144
    %v225 = vunpack.c.l.bf16 %v145
    %v226 = vunpack.c.l.bf16 %v146
    %v227 = vunpack.c.l.bf16 %v147
    %v230 = vlaneseq
    %v231 = vshrl.u32 %v230, 7
    %v232 = vsub.s32 0, %v231
    %v233 = vrot.slane %v61, %v232
    %v234 = vlaneseq
    %v235 = vshrl.u32 %v234, 7
    %v236 = vsub.s32 2, %v235
    %v237 = vrot.slane %v61, %v236
    %v238 = vlaneseq
    %v239 = vshrl.u32 %v238, 7
    %v240 = vsub.s32 4, %v239
    %v241 = vrot.slane %v61, %v240
    %v242 = vlaneseq
    %v243 = vshrl.u32 %v242, 7
    %v244 = vsub.s32 6, %v243
    %v245 = vrot.slane %v61, %v244
    %v246 = vlaneseq
    %v247 = vshrl.u32 %v246, 7
    %v248 = vsub.s32 0, %v247
    %v249 = vrot.slane %v62, %v248
    %v255 = vlaneseq
    %v256 = vshrl.u32 %v255, 7
    %v257 = vsub.s32 0, %v256
    %v258 = vrot.slane %v233, %v257
    %v259 = vlaneseq
    %v260 = vshrl.u32 %v259, 7
    %v261 = vsub.s32 0, %v260
    %v262 = vrot.slane %v237, %v261
    %v263 = vlaneseq
    %v264 = vshrl.u32 %v263, 7
    %v265 = vsub.s32 0, %v264
    %v266 = vrot.slane %v241, %v265
    %v267 = vlaneseq
    %v268 = vshrl.u32 %v267, 7
    %v269 = vsub.s32 0, %v268
    %v270 = vrot.slane %v245, %v269
    %v271 = vlaneseq
    %v272 = vshrl.u32 %v271, 7
    %v273 = vsub.s32 0, %v272
    %v274 = vrot.slane %v249, %v273
    %vm275 = vcmask 261120
    %v277 = vsel %vm275, %v24, 0
    %v280 = vsel %vm275, %v25, 0
    %282 = vmatprep.subr.mxu0 %v41
    %283 = vmatpush1.msra.mxu0 %v40
    %284 = vmatprep.subr.mxu0 %v46
    %285 = vmatpush1.msra.mxu0 %v45
    %286 = vmatprep.subr.mxu0 %v51
    %287 = vmatpush1.msra.mxu0 %v50
    %288 = vmatprep.subr.mxu0 %v56
    %289 = vmatpush1.msra.mxu0 %v55
    %290 = vmatprep.subr.mxu0 0.0
    %291 = vmatpush1.msra.mxu0 0.0
    %292 = vmatprep.subr.mxu0 0.0
    %293 = vmatpush1.msra.mxu0 0.0
    %294 = vmatprep.subr.mxu0 0.0
    %295 = vmatpush1.msra.mxu0 0.0
    %296 = vmatprep.subr.mxu0 0.0
    %297 = vmatpush1.msra.mxu0 0.0
    %298 = vmatprep.subr.mxu0 0.0
    %299 = vmatpush1.msra.mxu0 0.0
    %300 = vmatprep.subr.mxu0 0.0
    %301 = vmatpush1.msra.mxu0 0.0
    %302 = vmatprep.subr.mxu0 0.0
    %303 = vmatpush1.msra.mxu0 0.0
    %304 = vmatprep.subr.mxu0 0.0
    %305 = vmatpush1.msra.mxu0 0.0
    %306 = vmatprep.subr.mxu0 0.0
    %307 = vmatpush1.msra.mxu0 0.0
    %308 = vmatprep.subr.mxu0 0.0
    %309 = vmatpush1.msra.mxu0 0.0
    %310 = vmatprep.subr.mxu0 0.0
    %311 = vmatpush1.msra.mxu0 0.0
    %312 = vmatprep.subr.mxu0 0.0
    %313 = vmatpush1.msra.mxu0 0.0
    %314 = vmatprep.subr.mxu0 0.0
    %315 = vmatpush1.msra.mxu0 0.0
    %316 = vmatprep.subr.mxu0 0.0
    %317 = vmatpush1.msra.mxu0 0.0
    %318 = vmatprep.subr.mxu0 0.0
    %319 = vmatpush1.msra.mxu0 0.0
    %320 = vmatprep.subr.mxu0 0.0
    %321 = vmatpush1.msra.mxu0 0.0
    %322 = vmatprep.subr.mxu0 0.0
    %323 = vmatpush1.msra.mxu0 0.0
    %324 = vmatprep.subr.mxu0 0.0
    %325 = vmatpush1.msra.mxu0 0.0
    %326 = vmatprep.subr.mxu0 0.0
    %327 = vmatpush1.msra.mxu0 0.0
    %328 = vmatprep.subr.mxu0 0.0
    %329 = vmatpush1.msra.mxu0 0.0
    %330 = vmatprep.subr.mxu0 0.0
    %331 = vmatpush1.msra.mxu0 0.0
    %332 = vmatprep.subr.mxu0 0.0
    %333 = vmatpush1.msra.mxu0 0.0
    %334 = vmatprep.subr.mxu0 0.0
    %335 = vmatpush1.msra.mxu0 0.0
    %336 = vmatprep.subr.mxu0 0.0
    %337 = vmatpush1.msra.mxu0 0.0
    %338 = vmatprep.subr.mxu0 0.0
    %339 = vmatpush1.msra.mxu0 0.0
    %340 = vmatprep.subr.mxu0 0.0
    %341 = vmatpush1.msra.mxu0 0.0
    %342 = vmatprep.subr.mxu0 0.0
    %343 = vmatpush1.msra.mxu0 0.0
    %344 = vmatprep.subr.mxu0 0.0
    %345 = vmatpush1.msra.mxu0 0.0
    %346 = vmatprep.mubr.f32.mxu0 0.0
    %347 = vmatmul.mubr.f32.gmra.mrb[0].mxu0 %v277
    %v348 = vpop.f32.mrb[0].mxu0
    %v349 = vadd.f32 %v258, %v348
    %v350 = vpop.f32.mrb[0].mxu0
    %v351 = vadd.f32 %v262, %v350
    %352 = vmatprep.mubr.f32.mxu0 0.0
    %353 = vmatmul.mubr.f32.gmra.mrb[0].mxu0 %v280
    %v354 = vpop.f32.mrb[0].mxu0
    %v355 = vadd.f32 %v258, %v354
    %v356 = vpop.f32.mrb[0].mxu0
    %v357 = vadd.f32 %v262, %v356
    %358 = vdwg.mxu0
    %359 = vmatprep.subr.mxu0 %v43
    %360 = vmatpush1.msra.mxu0 %v42
    %361 = vmatprep.subr.mxu0 %v48
    %362 = vmatpush1.msra.mxu0 %v47
    %363 = vmatprep.subr.mxu0 %v53
    %364 = vmatpush1.msra.mxu0 %v52
    %365 = vmatprep.subr.mxu0 %v58
    %366 = vmatpush1.msra.mxu0 %v57
    %367 = vmatprep.subr.mxu0 0.0
    %368 = vmatpush1.msra.mxu0 0.0
    %369 = vmatprep.subr.mxu0 0.0
    %370 = vmatpush1.msra.mxu0 0.0
    %371 = vmatprep.subr.mxu0 0.0
    %372 = vmatpush1.msra.mxu0 0.0
    %373 = vmatprep.subr.mxu0 0.0
    %374 = vmatpush1.msra.mxu0 0.0
    %375 = vmatprep.subr.mxu0 0.0
    %376 = vmatpush1.msra.mxu0 0.0
    %377 = vmatprep.subr.mxu0 0.0
    %378 = vmatpush1.msra.mxu0 0.0
    %379 = vmatprep.subr.mxu0 0.0
    %380 = vmatpush1.msra.mxu0 0.0
    %381 = vmatprep.subr.mxu0 0.0
    %382 = vmatpush1.msra.mxu0 0.0
    %383 = vmatprep.subr.mxu0 0.0
    %384 = vmatpush1.msra.mxu0 0.0
    %385 = vmatprep.subr.mxu0 0.0
    %386 = vmatpush1.msra.mxu0 0.0
    %387 = vmatprep.subr.mxu0 0.0
    %388 = vmatpush1.msra.mxu0 0.0
    %389 = vmatprep.subr.mxu0 0.0
    %390 = vmatpush1.msra.mxu0 0.0
    %391 = vmatprep.subr.mxu0 0.0
    %392 = vmatpush1.msra.mxu0 0.0
    %393 = vmatprep.subr.mxu0 0.0
    %394 = vmatpush1.msra.mxu0 0.0
    %395 = vmatprep.subr.mxu0 0.0
    %396 = vmatpush1.msra.mxu0 0.0
    %397 = vmatprep.subr.mxu0 0.0
    %398 = vmatpush1.msra.mxu0 0.0
    %399 = vmatprep.subr.mxu0 0.0
    %400 = vmatpush1.msra.mxu0 0.0
    %401 = vmatprep.subr.mxu0 0.0
    %402 = vmatpush1.msra.mxu0 0.0
    %403 = vmatprep.subr.mxu0 0.0
    %404 = vmatpush1.msra.mxu0 0.0
    %405 = vmatprep.subr.mxu0 0.0
    %406 = vmatpush1.msra.mxu0 0.0
    %407 = vmatprep.subr.mxu0 0.0
    %408 = vmatpush1.msra.mxu0 0.0
    %409 = vmatprep.subr.mxu0 0.0
    %410 = vmatpush1.msra.mxu0 0.0
    %411 = vmatprep.subr.mxu0 0.0
    %412 = vmatpush1.msra.mxu0 0.0
    %413 = vmatprep.subr.mxu0 0.0
    %414 = vmatpush1.msra.mxu0 0.0
    %415 = vmatprep.subr.mxu0 0.0
    %416 = vmatpush1.msra.mxu0 0.0
    %417 = vmatprep.subr.mxu0 0.0
    %418 = vmatpush1.msra.mxu0 0.0
    %419 = vmatprep.subr.mxu0 0.0
    %420 = vmatpush1.msra.mxu0 0.0
    %421 = vmatprep.subr.mxu0 0.0
    %422 = vmatpush1.msra.mxu0 0.0
    %423 = vmatprep.mubr.f32.mxu0 0.0
    %424 = vmatmul.mubr.f32.gmra.mrb[0].mxu0 %v277
    %v425 = vpop.f32.mrb[0].mxu0
    %v426 = vadd.f32 %v266, %v425
    %v427 = vpop.f32.mrb[0].mxu0
    %v428 = vadd.f32 %v270, %v427
    %429 = vmatprep.mubr.f32.mxu0 0.0
    %430 = vmatmul.mubr.f32.gmra.mrb[0].mxu0 %v280
    %v431 = vpop.f32.mrb[0].mxu0
    %v432 = vadd.f32 %v266, %v431
    %v433 = vpop.f32.mrb[0].mxu0
    %v434 = vadd.f32 %v270, %v433
    %435 = vdwg.mxu0
    %436 = vmatprep.subr.mxu0 0.0
    %437 = vmatpush1.msra.mxu0 %v44
    %438 = vmatprep.subr.mxu0 0.0
    %439 = vmatpush1.msra.mxu0 %v49
    %440 = vmatprep.subr.mxu0 0.0
    %441 = vmatpush1.msra.mxu0 %v54
    %442 = vmatprep.subr.mxu0 0.0
    %443 = vmatpush1.msra.mxu0 %v59
    %444 = vmatprep.subr.mxu0 0.0
    %445 = vmatpush1.msra.mxu0 0.0
    %446 = vmatprep.subr.mxu0 0.0
    %447 = vmatpush1.msra.mxu0 0.0
    %448 = vmatprep.subr.mxu0 0.0
    %449 = vmatpush1.msra.mxu0 0.0
    %450 = vmatprep.subr.mxu0 0.0
    %451 = vmatpush1.msra.mxu0 0.0
    %452 = vmatprep.subr.mxu0 0.0
    %453 = vmatpush1.msra.mxu0 0.0
    %454 = vmatprep.subr.mxu0 0.0
    %455 = vmatpush1.msra.mxu0 0.0
    %456 = vmatprep.subr.mxu0 0.0
    %457 = vmatpush1.msra.mxu0 0.0
    %458 = vmatprep.subr.mxu0 0.0
    %459 = vmatpush1.msra.mxu0 0.0
    %460 = vmatprep.subr.mxu0 0.0
    %461 = vmatpush1.msra.mxu0 0.0
    %462 = vmatprep.subr.mxu0 0.0
    %463 = vmatpush1.msra.mxu0 0.0
    %464 = vmatprep.subr.mxu0 0.0
    %465 = vmatpush1.msra.mxu0 0.0
    %466 = vmatprep.subr.mxu0 0.0
    %467 = vmatpush1.msra.mxu0 0.0
    %468 = vmatprep.subr.mxu0 0.0
    %469 = vmatpush1.msra.mxu0 0.0
    %470 = vmatprep.subr.mxu0 0.0
    %471 = vmatpush1.msra.mxu0 0.0
    %472 = vmatprep.subr.mxu0 0.0
    %473 = vmatpush1.msra.mxu0 0.0
    %474 = vmatprep.subr.mxu0 0.0
    %475 = vmatpush1.msra.mxu0 0.0
    %476 = vmatprep.subr.mxu0 0.0
    %477 = vmatpush1.msra.mxu0 0.0
    %478 = vmatprep.subr.mxu0 0.0
    %479 = vmatpush1.msra.mxu0 0.0
    %480 = vmatprep.subr.mxu0 0.0
    %481 = vmatpush1.msra.mxu0 0.0
    %482 = vmatprep.subr.mxu0 0.0
    %483 = vmatpush1.msra.mxu0 0.0
    %484 = vmatprep.subr.mxu0 0.0
    %485 = vmatpush1.msra.mxu0 0.0
    %486 = vmatprep.subr.mxu0 0.0
    %487 = vmatpush1.msra.mxu0 0.0
    %488 = vmatprep.subr.mxu0 0.0
    %489 = vmatpush1.msra.mxu0 0.0
    %490 = vmatprep.subr.mxu0 0.0
    %491 = vmatpush1.msra.mxu0 0.0
    %492 = vmatprep.subr.mxu0 0.0
    %493 = vmatpush1.msra.mxu0 0.0
    %494 = vmatprep.subr.mxu0 0.0
    %495 = vmatpush1.msra.mxu0 0.0
    %496 = vmatprep.subr.mxu0 0.0
    %497 = vmatpush1.msra.mxu0 0.0
    %498 = vmatprep.subr.mxu0 0.0
    %499 = vmatpush1.msra.mxu0 0.0
    %500 = vmatprep.mubr.f32.mxu0 0.0
    %501 = vmatmul.mubr.f32.gmra.mrb[0].mxu0 %v277
    %v502 = vpop.f32.mrb[0].mxu0
    %v503 = vadd.f32 %v274, %v502
    %v504 = vpop.f32.mrb[0].mxu0
    %505 = vmatprep.mubr.f32.mxu0 0.0
    %506 = vmatmul.mubr.f32.gmra.mrb[0].mxu0 %v280
    %v507 = vpop.f32.mrb[0].mxu0
    %v508 = vadd.f32 %v274, %v507
    %v509 = vpop.f32.mrb[0].mxu0
    %510 = vdwg.mxu0
    %vm511 = vcmp.gt.f32.partialorder %v503, 20.0
    %vm512 = vcmp.gt.f32.partialorder %v508, 20.0
    %v513 = vmin.f32 %v503, 20.0
    %v514 = vmin.f32 %v508, 20.0
    %v515 = vmul.f32 %v513, 1.442695
    %v516 = vpow.pop %v515
    %v517 = vmul.f32 %v514, 1.442695
    %v518 = vpow.pop %v517
    %v519 = vadd.f32 %v516, 1.0
    %v520 = vlog2.pop %v519
    %v521 = vmul.f32 %v520, 0.6931472
    %v522 = vmul.f32 -0.5, %v516
    %v523 = vadd.f32 %v522, 1.0
    %v524 = vmul.f32 %v523, %v516
    %v525 = vand.u32 2147483647, %v516
    %vm526 = vcmp.lt.f32.partialorder %v525, 0.0004427343
    %v527 = vsel %vm526, %v524, %v521
    %v528 = vadd.f32 %v518, 1.0
    %v529 = vlog2.pop %v528
    %v530 = vmul.f32 %v529, 0.6931472
    %v531 = vmul.f32 -0.5, %v518
    %v532 = vadd.f32 %v531, 1.0
    %v533 = vmul.f32 %v532, %v518
    %v534 = vand.u32 2147483647, %v518
    %vm535 = vcmp.lt.f32.partialorder %v534, 0.0004427343
    %v536 = vsel %vm535, %v533, %v530
    %v537 = vsel %vm511, %v503, %v527
    %v538 = vsel %vm512, %v508, %v536
    %541 = vrot.lane.b32.xlu0 %v537, 124
    %v542 = vpop.permute.xlu0 %541
    %543 = vrot.lane.b32.xlu0 %v538, 124
    %v544 = vpop.permute.xlu0 %543
    %v547 = vmul.f32 %v26, %v542
    %v548 = vmul.f32 %v27, %v544
    %v549 = vadd.f32 %v503, %v547
    %v550 = vadd.f32 %v508, %v548
    %v551 = vlaneseq
    %v552 = vand.u32 %v551, 127
    %vm553 = vcmask 31744
    %v554 = vsel %vm553, %v549, -inf
    %555 = vmax.xlane.f32.xlu0 %v554
    %v556 = vpop.xlane.xlu0 %555
    %v557 = vsel %vm553, %v550, -inf
    %558 = vmax.xlane.f32.xlu0 %v557
    %v559 = vpop.xlane.xlu0 %558
    %vm560 = vcmp.eq.f32.partialorder %v549, %v556
    %vm561 = vcmp.eq.f32.partialorder %v550, %v559
    %v562 = vsel %vm560, %v552, 4
    %v563 = vsel %vm561, %v552, 4
    %v564 = vsel %vm553, %v562, 2147483647
    %v565 = vand.u32 %v564, 65535
    %v566 = vshra.s32 %v564, 16
    %v567 = vcvt.s32.f32 %v565
    %v568 = vcvt.s32.f32 %v566
    %569 = vmin.xlane.f32.xlu0 %v568
    %v570 = vpop.xlane.xlu0 %569
    %vm571 = vcmp.eq.f32.partialorder %v568, %v570
    %v572 = vsel %vm571, %v567, inf
    %573 = vmin.xlane.f32.xlu0 %v572
    %v574 = vpop.xlane.xlu0 %573
    %v575 = vcvt.f32.s32 %v574
    %v576 = vcvt.f32.s32 %v570
    %v577 = vshll.u32 %v576, 16
    %v578 = vadd.s32 %v577, %v575
    %v579 = vsel %vm553, %v563, 2147483647
    %v580 = vand.u32 %v579, 65535
    %v581 = vshra.s32 %v579, 16
    %v582 = vcvt.s32.f32 %v580
    %v583 = vcvt.s32.f32 %v581
    %584 = vmin.xlane.f32.xlu0 %v583
    %v585 = vpop.xlane.xlu0 %584
    %vm586 = vcmp.eq.f32.partialorder %v583, %v585
    %v587 = vsel %vm586, %v582, inf
    %588 = vmin.xlane.f32.xlu0 %v587
    %v589 = vpop.xlane.xlu0 %588
    %v590 = vcvt.f32.s32 %v589
    %v591 = vcvt.f32.s32 %v585
    %v592 = vshll.u32 %v591, 16
    %v593 = vadd.s32 %v592, %v590
    %vm594 = vcmp.eq.s32.totalorder %v552, %v578
    %vm595 = vcmp.eq.s32.totalorder %v552, %v593
    %v596 = vsel %vm594, -inf, %v549
    %v597 = vsel %vm595, -inf, %v550
    %v598 = vsel %vm553, %v596, -inf
    %599 = vmax.xlane.f32.xlu0 %v598
    %v600 = vpop.xlane.xlu0 %599
    %v601 = vsel %vm553, %v597, -inf
    %602 = vmax.xlane.f32.xlu0 %v601
    %v603 = vpop.xlane.xlu0 %602
    %vm604 = vcmp.eq.f32.partialorder %v596, %v600
    %vm605 = vcmp.eq.f32.partialorder %v597, %v603
    %v606 = vsel %vm604, %v552, 4
    %v607 = vsel %vm605, %v552, 4
    %v608 = vsel %vm553, %v606, 2147483647
    %v609 = vand.u32 %v608, 65535
    %v610 = vshra.s32 %v608, 16
    %v611 = vcvt.s32.f32 %v609
    %v612 = vcvt.s32.f32 %v610
    %613 = vmin.xlane.f32.xlu0 %v612
    %v614 = vpop.xlane.xlu0 %613
    %vm615 = vcmp.eq.f32.partialorder %v612, %v614
    %v616 = vsel %vm615, %v611, inf
    %617 = vmin.xlane.f32.xlu0 %v616
    %v618 = vpop.xlane.xlu0 %617
    %v619 = vcvt.f32.s32 %v618
    %v620 = vcvt.f32.s32 %v614
    %v621 = vshll.u32 %v620, 16
    %v622 = vadd.s32 %v621, %v619
    %v623 = vsel %vm553, %v607, 2147483647
    %v624 = vand.u32 %v623, 65535
    %v625 = vshra.s32 %v623, 16
    %v626 = vcvt.s32.f32 %v624
    %v627 = vcvt.s32.f32 %v625
    %628 = vmin.xlane.f32.xlu0 %v627
    %v629 = vpop.xlane.xlu0 %628
    %vm630 = vcmp.eq.f32.partialorder %v627, %v629
    %v631 = vsel %vm630, %v626, inf
    %632 = vmin.xlane.f32.xlu0 %v631
    %v633 = vpop.xlane.xlu0 %632
    %v634 = vcvt.f32.s32 %v633
    %v635 = vcvt.f32.s32 %v629
    %v636 = vshll.u32 %v635, 16
    %v637 = vadd.s32 %v636, %v634
    %vm638 = vcmp.eq.s32.totalorder %v552, %v622
    %vm639 = vcmp.eq.s32.totalorder %v552, %v637
    %vm640 = vmor %vm594, %vm638
    %vm641 = vmor %vm595, %vm639
    %v642 = vsel %vm640, %v549, -inf
    %v643 = vsel %vm641, %v550, -inf
    %v644 = vsel %vm553, %v642, -inf
    %645 = vmax.xlane.f32.xlu0 %v644
    %v646 = vpop.xlane.xlu0 %645
    %v647 = vsel %vm553, %v643, -inf
    %648 = vmax.xlane.f32.xlu0 %v647
    %v649 = vpop.xlane.xlu0 %648
    %v650 = vsub.f32 %v642, %v646
    %v651 = vsub.f32 %v643, %v649
    %v652 = vmul.f32 %v650, 1.442695
    %v653 = vpow.pop %v652
    %v654 = vmul.f32 %v651, 1.442695
    %v655 = vpow.pop %v654
    %v656 = vsel %vm553, %v653, 0.0
    %657 = vadd.xlane.f32.xlu0 %v656
    %v658 = vpop.xlane.xlu0 %657
    %v659 = vsel %vm553, %v655, 0.0
    %660 = vadd.xlane.f32.xlu0 %v659
    %v661 = vpop.xlane.xlu0 %660
    %v662 = vrcp.pop %v658
    %v663 = vmul.f32 %v653, %v662
    %v664 = vrcp.pop %v661
    %v665 = vmul.f32 %v655, %v664
    %v666 = vadd.s32 %v552, 128
    %v667 = vadd.s32 %v552, 256
    %v668 = vadd.s32 %v552, 384
    %v669 = vadd.s32 %v552, 512
    %vm670 = vcmp.lt.s32.totalorder %v552, 512
    %vm671 = vcmp.lt.s32.totalorder %v666, 512
    %vm672 = vcmp.lt.s32.totalorder %v667, 512
    %vm673 = vcmp.lt.s32.totalorder %v668, 512
    %vm674 = vcmp.lt.s32.totalorder %v669, 512
    %v675 = vmax.f32 %v349, 0.0
    %v676 = vmax.f32 %v351, 0.0
    %v677 = vmax.f32 %v426, 0.0
    %v678 = vmax.f32 %v428, 0.0
    %v679 = vmax.f32 %v503, 0.0
    %v680 = vmax.f32 %v355, 0.0
    %v681 = vmax.f32 %v357, 0.0
    %v682 = vmax.f32 %v432, 0.0
    %v683 = vmax.f32 %v434, 0.0
    %v684 = vmax.f32 %v508, 0.0
    %v685 = vsel %vm670, %v675, 1.0
    %v686 = vsel %vm671, %v676, 1.0
    %v687 = vsel %vm672, %v677, 1.0
    %v688 = vsel %vm673, %v678, 1.0
    %v689 = vsel %vm674, %v679, 1.0
    %v690 = vsel %vm670, %v680, 1.0
    %v691 = vsel %vm671, %v681, 1.0
    %v692 = vsel %vm672, %v682, 1.0
    %v693 = vsel %vm673, %v683, 1.0
    %v694 = vsel %vm674, %v684, 1.0
    %v698 = vcombine.high %v65, %v65
    %v699 = vcombine.high %v66, %v66
    %v701 = vsel %vm553, %v663, 0
    %v704 = vsel %vm553, %v665, 0
    %vm706 = vcmask 1043456
    %v707 = vsel %vm706, %v65, 0
    %v709 = vsel %vm706, %v698, 0
    %v711 = vsel %vm706, %v66, 0
    %v713 = vsel %vm706, %v699, 0
    %v715 = vsel %vm706, %v67, 0
    %717 = vmatprep.subr.mxu0 %v709
    %718 = vmatpush1.msra.mxu0 %v707
    %719 = vmatprep.subr.mxu0 0.0
    %720 = vmatpush1.msra.mxu0 0.0
    %721 = vmatprep.subr.mxu0 0.0
    %722 = vmatpush1.msra.mxu0 0.0
    %723 = vmatprep.subr.mxu0 0.0
    %724 = vmatpush1.msra.mxu0 0.0
    %725 = vmatprep.subr.mxu0 0.0
    %726 = vmatpush1.msra.mxu0 0.0
    %727 = vmatprep.subr.mxu0 0.0
    %728 = vmatpush1.msra.mxu0 0.0
    %729 = vmatprep.subr.mxu0 0.0
    %730 = vmatpush1.msra.mxu0 0.0
    %731 = vmatprep.subr.mxu0 0.0
    %732 = vmatpush1.msra.mxu0 0.0
    %733 = vmatprep.subr.mxu0 0.0
    %734 = vmatpush1.msra.mxu0 0.0
    %735 = vmatprep.subr.mxu0 0.0
    %736 = vmatpush1.msra.mxu0 0.0
    %737 = vmatprep.subr.mxu0 0.0
    %738 = vmatpush1.msra.mxu0 0.0
    %739 = vmatprep.subr.mxu0 0.0
    %740 = vmatpush1.msra.mxu0 0.0
    %741 = vmatprep.subr.mxu0 0.0
    %742 = vmatpush1.msra.mxu0 0.0
    %743 = vmatprep.subr.mxu0 0.0
    %744 = vmatpush1.msra.mxu0 0.0
    %745 = vmatprep.subr.mxu0 0.0
    %746 = vmatpush1.msra.mxu0 0.0
    %747 = vmatprep.subr.mxu0 0.0
    %748 = vmatpush1.msra.mxu0 0.0
    %749 = vmatprep.subr.mxu0 0.0
    %750 = vmatpush1.msra.mxu0 0.0
    %751 = vmatprep.subr.mxu0 0.0
    %752 = vmatpush1.msra.mxu0 0.0
    %753 = vmatprep.subr.mxu0 0.0
    %754 = vmatpush1.msra.mxu0 0.0
    %755 = vmatprep.subr.mxu0 0.0
    %756 = vmatpush1.msra.mxu0 0.0
    %757 = vmatprep.subr.mxu0 0.0
    %758 = vmatpush1.msra.mxu0 0.0
    %759 = vmatprep.subr.mxu0 0.0
    %760 = vmatpush1.msra.mxu0 0.0
    %761 = vmatprep.subr.mxu0 0.0
    %762 = vmatpush1.msra.mxu0 0.0
    %763 = vmatprep.subr.mxu0 0.0
    %764 = vmatpush1.msra.mxu0 0.0
    %765 = vmatprep.subr.mxu0 0.0
    %766 = vmatpush1.msra.mxu0 0.0
    %767 = vmatprep.subr.mxu0 0.0
    %768 = vmatpush1.msra.mxu0 0.0
    %769 = vmatprep.subr.mxu0 0.0
    %770 = vmatpush1.msra.mxu0 0.0
    %771 = vmatprep.subr.mxu0 0.0
    %772 = vmatpush1.msra.mxu0 0.0
    %773 = vmatprep.subr.mxu0 0.0
    %774 = vmatpush1.msra.mxu0 0.0
    %775 = vmatprep.subr.mxu0 0.0
    %776 = vmatpush1.msra.mxu0 0.0
    %777 = vmatprep.subr.mxu0 0.0
    %778 = vmatpush1.msra.mxu0 0.0
    %779 = vmatprep.subr.mxu0 0.0
    %780 = vmatpush1.msra.mxu0 0.0
    %781 = vmatprep.mubr.f32.mxu0 0.0
    %782 = vmatmul.mubr.f32.gmra.mrb[0].mxu0 %v701
    %v783 = vpop.f32.mrb[0].mxu0
    %v784 = vadd.f32 0.0, %v783
    %v785 = vpop.f32.mrb[0].mxu0
    %v786 = vadd.f32 0.0, %v785
    %787 = vmatprep.mubr.f32.mxu0 0.0
    %788 = vmatmul.mubr.f32.gmra.mrb[0].mxu0 %v704
    %v789 = vpop.f32.mrb[0].mxu0
    %v790 = vadd.f32 0.0, %v789
    %v791 = vpop.f32.mrb[0].mxu0
    %v792 = vadd.f32 0.0, %v791
    %793 = vdwg.mxu0
    %794 = vmatprep.subr.mxu0 %v713
    %795 = vmatpush1.msra.mxu0 %v711
    %796 = vmatprep.subr.mxu0 0.0
    %797 = vmatpush1.msra.mxu0 0.0
    %798 = vmatprep.subr.mxu0 0.0
    %799 = vmatpush1.msra.mxu0 0.0
    %800 = vmatprep.subr.mxu0 0.0
    %801 = vmatpush1.msra.mxu0 0.0
    %802 = vmatprep.subr.mxu0 0.0
    %803 = vmatpush1.msra.mxu0 0.0
    %804 = vmatprep.subr.mxu0 0.0
    %805 = vmatpush1.msra.mxu0 0.0
    %806 = vmatprep.subr.mxu0 0.0
    %807 = vmatpush1.msra.mxu0 0.0
    %808 = vmatprep.subr.mxu0 0.0
    %809 = vmatpush1.msra.mxu0 0.0
    %810 = vmatprep.subr.mxu0 0.0
    %811 = vmatpush1.msra.mxu0 0.0
    %812 = vmatprep.subr.mxu0 0.0
    %813 = vmatpush1.msra.mxu0 0.0
    %814 = vmatprep.subr.mxu0 0.0
    %815 = vmatpush1.msra.mxu0 0.0
    %816 = vmatprep.subr.mxu0 0.0
    %817 = vmatpush1.msra.mxu0 0.0
    %818 = vmatprep.subr.mxu0 0.0
    %819 = vmatpush1.msra.mxu0 0.0
    %820 = vmatprep.subr.mxu0 0.0
    %821 = vmatpush1.msra.mxu0 0.0
    %822 = vmatprep.subr.mxu0 0.0
    %823 = vmatpush1.msra.mxu0 0.0
    %824 = vmatprep.subr.mxu0 0.0
    %825 = vmatpush1.msra.mxu0 0.0
    %826 = vmatprep.subr.mxu0 0.0
    %827 = vmatpush1.msra.mxu0 0.0
    %828 = vmatprep.subr.mxu0 0.0
    %829 = vmatpush1.msra.mxu0 0.0
    %830 = vmatprep.subr.mxu0 0.0
    %831 = vmatpush1.msra.mxu0 0.0
    %832 = vmatprep.subr.mxu0 0.0
    %833 = vmatpush1.msra.mxu0 0.0
    %834 = vmatprep.subr.mxu0 0.0
    %835 = vmatpush1.msra.mxu0 0.0
    %836 = vmatprep.subr.mxu0 0.0
    %837 = vmatpush1.msra.mxu0 0.0
    %838 = vmatprep.subr.mxu0 0.0
    %839 = vmatpush1.msra.mxu0 0.0
    %840 = vmatprep.subr.mxu0 0.0
    %841 = vmatpush1.msra.mxu0 0.0
    %842 = vmatprep.subr.mxu0 0.0
    %843 = vmatpush1.msra.mxu0 0.0
    %844 = vmatprep.subr.mxu0 0.0
    %845 = vmatpush1.msra.mxu0 0.0
    %846 = vmatprep.subr.mxu0 0.0
    %847 = vmatpush1.msra.mxu0 0.0
    %848 = vmatprep.subr.mxu0 0.0
    %849 = vmatpush1.msra.mxu0 0.0
    %850 = vmatprep.subr.mxu0 0.0
    %851 = vmatpush1.msra.mxu0 0.0
    %852 = vmatprep.subr.mxu0 0.0
    %853 = vmatpush1.msra.mxu0 0.0
    %854 = vmatprep.subr.mxu0 0.0
    %855 = vmatpush1.msra.mxu0 0.0
    %856 = vmatprep.subr.mxu0 0.0
    %857 = vmatpush1.msra.mxu0 0.0
    %858 = vmatprep.mubr.f32.mxu0 0.0
    %859 = vmatmul.mubr.f32.gmra.mrb[0].mxu0 %v701
    %v860 = vpop.f32.mrb[0].mxu0
    %v861 = vadd.f32 0.0, %v860
    %v862 = vpop.f32.mrb[0].mxu0
    %v863 = vadd.f32 0.0, %v862
    %864 = vmatprep.mubr.f32.mxu0 0.0
    %865 = vmatmul.mubr.f32.gmra.mrb[0].mxu0 %v704
    %v866 = vpop.f32.mrb[0].mxu0
    %v867 = vadd.f32 0.0, %v866
    %v868 = vpop.f32.mrb[0].mxu0
    %v869 = vadd.f32 0.0, %v868
    %870 = vdwg.mxu0
    %871 = vmatprep.subr.mxu0 0.0
    %872 = vmatpush1.msra.mxu0 %v715
    %873 = vmatprep.subr.mxu0 0.0
    %874 = vmatpush1.msra.mxu0 0.0
    %875 = vmatprep.subr.mxu0 0.0
    %876 = vmatpush1.msra.mxu0 0.0
    %877 = vmatprep.subr.mxu0 0.0
    %878 = vmatpush1.msra.mxu0 0.0
    %879 = vmatprep.subr.mxu0 0.0
    %880 = vmatpush1.msra.mxu0 0.0
    %881 = vmatprep.subr.mxu0 0.0
    %882 = vmatpush1.msra.mxu0 0.0
    %883 = vmatprep.subr.mxu0 0.0
    %884 = vmatpush1.msra.mxu0 0.0
    %885 = vmatprep.subr.mxu0 0.0
    %886 = vmatpush1.msra.mxu0 0.0
    %887 = vmatprep.subr.mxu0 0.0
    %888 = vmatpush1.msra.mxu0 0.0
    %889 = vmatprep.subr.mxu0 0.0
    %890 = vmatpush1.msra.mxu0 0.0
    %891 = vmatprep.subr.mxu0 0.0
    %892 = vmatpush1.msra.mxu0 0.0
    %893 = vmatprep.subr.mxu0 0.0
    %894 = vmatpush1.msra.mxu0 0.0
    %895 = vmatprep.subr.mxu0 0.0
    %896 = vmatpush1.msra.mxu0 0.0
    %897 = vmatprep.subr.mxu0 0.0
    %898 = vmatpush1.msra.mxu0 0.0
    %899 = vmatprep.subr.mxu0 0.0
    %900 = vmatpush1.msra.mxu0 0.0
    %901 = vmatprep.subr.mxu0 0.0
    %902 = vmatpush1.msra.mxu0 0.0
    %903 = vmatprep.subr.mxu0 0.0
    %904 = vmatpush1.msra.mxu0 0.0
    %905 = vmatprep.subr.mxu0 0.0
    %906 = vmatpush1.msra.mxu0 0.0
    %907 = vmatprep.subr.mxu0 0.0
    %908 = vmatpush1.msra.mxu0 0.0
    %909 = vmatprep.subr.mxu0 0.0
    %910 = vmatpush1.msra.mxu0 0.0
    %911 = vmatprep.subr.mxu0 0.0
    %912 = vmatpush1.msra.mxu0 0.0
    %913 = vmatprep.subr.mxu0 0.0
    %914 = vmatpush1.msra.mxu0 0.0
    %915 = vmatprep.subr.mxu0 0.0
    %916 = vmatpush1.msra.mxu0 0.0
    %917 = vmatprep.subr.mxu0 0.0
    %918 = vmatpush1.msra.mxu0 0.0
    %919 = vmatprep.subr.mxu0 0.0
    %920 = vmatpush1.msra.mxu0 0.0
    %921 = vmatprep.subr.mxu0 0.0
    %922 = vmatpush1.msra.mxu0 0.0
    %923 = vmatprep.subr.mxu0 0.0
    %924 = vmatpush1.msra.mxu0 0.0
    %925 = vmatprep.subr.mxu0 0.0
    %926 = vmatpush1.msra.mxu0 0.0
    %927 = vmatprep.subr.mxu0 0.0
    %928 = vmatpush1.msra.mxu0 0.0
    %929 = vmatprep.subr.mxu0 0.0
    %930 = vmatpush1.msra.mxu0 0.0
    %931 = vmatprep.subr.mxu0 0.0
    %932 = vmatpush1.msra.mxu0 0.0
    %933 = vmatprep.subr.mxu0 0.0
    %934 = vmatpush1.msra.mxu0 0.0
    %935 = vmatprep.mubr.f32.mxu0 0.0
    %936 = vmatmul.mubr.f32.gmra.mrb[0].mxu0 %v701
    %v937 = vpop.f32.mrb[0].mxu0
    %v938 = vadd.f32 0.0, %v937
    %v939 = vpop.f32.mrb[0].mxu0
    %940 = vmatprep.mubr.f32.mxu0 0.0
    %941 = vmatmul.mubr.f32.gmra.mrb[0].mxu0 %v704
    %v942 = vpop.f32.mrb[0].mxu0
    %v943 = vadd.f32 0.0, %v942
    %v944 = vpop.f32.mrb[0].mxu0
    %945 = vdwg.mxu0
    %v946 = vmul.f32 %v685, %v784
    %v947 = vmul.f32 %v686, %v786
    %v948 = vmul.f32 %v687, %v861
    %v949 = vmul.f32 %v688, %v863
    %v950 = vmul.f32 %v689, %v938
    %v951 = vmul.f32 %v690, %v790
    %v952 = vmul.f32 %v691, %v792
    %v953 = vmul.f32 %v692, %v867
    %v954 = vmul.f32 %v693, %v869
    %v955 = vmul.f32 %v694, %v943
    %956 = vmatprep.subr.mxu0 0.0
    %957 = vmatpush1.msra.mxu0 %v148
    %958 = vmatprep.subr.mxu0 0.0
    %959 = vmatpush1.msra.mxu0 %v149
    %960 = vmatprep.subr.mxu0 0.0
    %961 = vmatpush1.msra.mxu0 %v150
    %962 = vmatprep.subr.mxu0 0.0
    %963 = vmatpush1.msra.mxu0 %v151
    %964 = vmatprep.subr.mxu0 0.0
    %965 = vmatpush1.msra.mxu0 %v152
    %966 = vmatprep.subr.mxu0 0.0
    %967 = vmatpush1.msra.mxu0 %v153
    %968 = vmatprep.subr.mxu0 0.0
    %969 = vmatpush1.msra.mxu0 %v154
    %970 = vmatprep.subr.mxu0 0.0
    %971 = vmatpush1.msra.mxu0 %v155
    %972 = vmatprep.subr.mxu0 0.0
    %973 = vmatpush1.msra.mxu0 %v156
    %974 = vmatprep.subr.mxu0 0.0
    %975 = vmatpush1.msra.mxu0 %v157
    %976 = vmatprep.subr.mxu0 0.0
    %977 = vmatpush1.msra.mxu0 %v158
    %978 = vmatprep.subr.mxu0 0.0
    %979 = vmatpush1.msra.mxu0 %v159
    %980 = vmatprep.subr.mxu0 0.0
    %981 = vmatpush1.msra.mxu0 %v160
    %982 = vmatprep.subr.mxu0 0.0
    %983 = vmatpush1.msra.mxu0 %v161
    %984 = vmatprep.subr.mxu0 0.0
    %985 = vmatpush1.msra.mxu0 %v162
    %986 = vmatprep.subr.mxu0 0.0
    %987 = vmatpush1.msra.mxu0 %v163
    %988 = vmatprep.subr.mxu0 0.0
    %989 = vmatpush1.msra.mxu0 %v164
    %990 = vmatprep.subr.mxu0 0.0
    %991 = vmatpush1.msra.mxu0 %v165
    %992 = vmatprep.subr.mxu0 0.0
    %993 = vmatpush1.msra.mxu0 %v166
    %994 = vmatprep.subr.mxu0 0.0
    %995 = vmatpush1.msra.mxu0 %v167
    %996 = vmatprep.subr.mxu0 0.0
    %997 = vmatpush1.msra.mxu0 %v168
    %998 = vmatprep.subr.mxu0 0.0
    %999 = vmatpush1.msra.mxu0 %v169
    %1000 = vmatprep.subr.mxu0 0.0
    %1001 = vmatpush1.msra.mxu0 %v170
    %1002 = vmatprep.subr.mxu0 0.0
    %1003 = vmatpush1.msra.mxu0 %v171
    %1004 = vmatprep.subr.mxu0 0.0
    %1005 = vmatpush1.msra.mxu0 %v172
    %1006 = vmatprep.subr.mxu0 0.0
    %1007 = vmatpush1.msra.mxu0 %v173
    %1008 = vmatprep.subr.mxu0 0.0
    %1009 = vmatpush1.msra.mxu0 %v174
    %1010 = vmatprep.subr.mxu0 0.0
    %1011 = vmatpush1.msra.mxu0 %v175
    %1012 = vmatprep.subr.mxu0 0.0
    %1013 = vmatpush1.msra.mxu0 %v176
    %1014 = vmatprep.subr.mxu0 0.0
    %1015 = vmatpush1.msra.mxu0 %v177
    %1016 = vmatprep.subr.mxu0 0.0
    %1017 = vmatpush1.msra.mxu0 %v178
    %1018 = vmatprep.subr.mxu0 0.0
    %1019 = vmatpush1.msra.mxu0 %v179
    %1020 = vmatprep.mubr.f32.mxu0 %v947
    %1021 = vmatmul.mubr.f32.gmra.mrb[0].mxu0 %v946
    %v1022 = vpop.f32.mrb[0].mxu0
    %v1023 = vadd.f32 0.0, %v1022
    %v1024 = vpop.f32.mrb[0].mxu0
    %1025 = vmatprep.mubr.f32.mxu0 %v952
    %1026 = vmatmul.mubr.f32.gmra.mrb[0].mxu0 %v951
    %v1027 = vpop.f32.mrb[0].mxu0
    %v1028 = vadd.f32 0.0, %v1027
    %v1029 = vpop.f32.mrb[0].mxu0
    %1030 = vdwg.mxu0
    %1031 = vmatprep.subr.mxu0 0.0
    %1032 = vmatpush1.msra.mxu0 %v180
    %1033 = vmatprep.subr.mxu0 0.0
    %1034 = vmatpush1.msra.mxu0 %v181
    %1035 = vmatprep.subr.mxu0 0.0
    %1036 = vmatpush1.msra.mxu0 %v182
    %1037 = vmatprep.subr.mxu0 0.0
    %1038 = vmatpush1.msra.mxu0 %v183
    %1039 = vmatprep.subr.mxu0 0.0
    %1040 = vmatpush1.msra.mxu0 %v184
    %1041 = vmatprep.subr.mxu0 0.0
    %1042 = vmatpush1.msra.mxu0 %v185
    %1043 = vmatprep.subr.mxu0 0.0
    %1044 = vmatpush1.msra.mxu0 %v186
    %1045 = vmatprep.subr.mxu0 0.0
    %1046 = vmatpush1.msra.mxu0 %v187
    %1047 = vmatprep.subr.mxu0 0.0
    %1048 = vmatpush1.msra.mxu0 %v188
    %1049 = vmatprep.subr.mxu0 0.0
    %1050 = vmatpush1.msra.mxu0 %v189
    %1051 = vmatprep.subr.mxu0 0.0
    %1052 = vmatpush1.msra.mxu0 %v190
    %1053 = vmatprep.subr.mxu0 0.0
    %1054 = vmatpush1.msra.mxu0 %v191
    %1055 = vmatprep.subr.mxu0 0.0
    %1056 = vmatpush1.msra.mxu0 %v192
    %1057 = vmatprep.subr.mxu0 0.0
    %1058 = vmatpush1.msra.mxu0 %v193
    %1059 = vmatprep.subr.mxu0 0.0
    %1060 = vmatpush1.msra.mxu0 %v194
    %1061 = vmatprep.subr.mxu0 0.0
    %1062 = vmatpush1.msra.mxu0 %v195
    %1063 = vmatprep.subr.mxu0 0.0
    %1064 = vmatpush1.msra.mxu0 %v196
    %1065 = vmatprep.subr.mxu0 0.0
    %1066 = vmatpush1.msra.mxu0 %v197
    %1067 = vmatprep.subr.mxu0 0.0
    %1068 = vmatpush1.msra.mxu0 %v198
    %1069 = vmatprep.subr.mxu0 0.0
    %1070 = vmatpush1.msra.mxu0 %v199
    %1071 = vmatprep.subr.mxu0 0.0
    %1072 = vmatpush1.msra.mxu0 %v200
    %1073 = vmatprep.subr.mxu0 0.0
    %1074 = vmatpush1.msra.mxu0 %v201
    %1075 = vmatprep.subr.mxu0 0.0
    %1076 = vmatpush1.msra.mxu0 %v202
    %1077 = vmatprep.subr.mxu0 0.0
    %1078 = vmatpush1.msra.mxu0 %v203
    %1079 = vmatprep.subr.mxu0 0.0
    %1080 = vmatpush1.msra.mxu0 %v204
    %1081 = vmatprep.subr.mxu0 0.0
    %1082 = vmatpush1.msra.mxu0 %v205
    %1083 = vmatprep.subr.mxu0 0.0
    %1084 = vmatpush1.msra.mxu0 %v206
    %1085 = vmatprep.subr.mxu0 0.0
    %1086 = vmatpush1.msra.mxu0 %v207
    %1087 = vmatprep.subr.mxu0 0.0
    %1088 = vmatpush1.msra.mxu0 %v208
    %1089 = vmatprep.subr.mxu0 0.0
    %1090 = vmatpush1.msra.mxu0 %v209
    %1091 = vmatprep.subr.mxu0 0.0
    %1092 = vmatpush1.msra.mxu0 %v210
    %1093 = vmatprep.subr.mxu0 0.0
    %1094 = vmatpush1.msra.mxu0 %v211
    %1095 = vmatprep.mubr.f32.mxu0 %v949
    %1096 = vmatmul.mubr.f32.gmra.mrb[0].mxu0 %v948
    %v1097 = vpop.f32.mrb[0].mxu0
    %v1098 = vadd.f32 %v1023, %v1097
    %v1099 = vpop.f32.mrb[0].mxu0
    %1100 = vmatprep.mubr.f32.mxu0 %v954
    %1101 = vmatmul.mubr.f32.gmra.mrb[0].mxu0 %v953
    %v1102 = vpop.f32.mrb[0].mxu0
    %v1103 = vadd.f32 %v1028, %v1102
    %v1104 = vpop.f32.mrb[0].mxu0
    %1105 = vdwg.mxu0
    %1106 = vmatprep.subr.mxu0 0.0
    %1107 = vmatpush1.msra.mxu0 %v212
    %1108 = vmatprep.subr.mxu0 0.0
    %1109 = vmatpush1.msra.mxu0 %v213
    %1110 = vmatprep.subr.mxu0 0.0
    %1111 = vmatpush1.msra.mxu0 %v214
    %1112 = vmatprep.subr.mxu0 0.0
    %1113 = vmatpush1.msra.mxu0 %v215
    %1114 = vmatprep.subr.mxu0 0.0
    %1115 = vmatpush1.msra.mxu0 %v216
    %1116 = vmatprep.subr.mxu0 0.0
    %1117 = vmatpush1.msra.mxu0 %v217
    %1118 = vmatprep.subr.mxu0 0.0
    %1119 = vmatpush1.msra.mxu0 %v218
    %1120 = vmatprep.subr.mxu0 0.0
    %1121 = vmatpush1.msra.mxu0 %v219
    %1122 = vmatprep.subr.mxu0 0.0
    %1123 = vmatpush1.msra.mxu0 %v220
    %1124 = vmatprep.subr.mxu0 0.0
    %1125 = vmatpush1.msra.mxu0 %v221
    %1126 = vmatprep.subr.mxu0 0.0
    %1127 = vmatpush1.msra.mxu0 %v222
    %1128 = vmatprep.subr.mxu0 0.0
    %1129 = vmatpush1.msra.mxu0 %v223
    %1130 = vmatprep.subr.mxu0 0.0
    %1131 = vmatpush1.msra.mxu0 %v224
    %1132 = vmatprep.subr.mxu0 0.0
    %1133 = vmatpush1.msra.mxu0 %v225
    %1134 = vmatprep.subr.mxu0 0.0
    %1135 = vmatpush1.msra.mxu0 %v226
    %1136 = vmatprep.subr.mxu0 0.0
    %1137 = vmatpush1.msra.mxu0 %v227
    %1138 = vmatprep.subr.mxu0 0.0
    %1139 = vmatpush1.msra.mxu0 0.0
    %1140 = vmatprep.subr.mxu0 0.0
    %1141 = vmatpush1.msra.mxu0 0.0
    %1142 = vmatprep.subr.mxu0 0.0
    %1143 = vmatpush1.msra.mxu0 0.0
    %1144 = vmatprep.subr.mxu0 0.0
    %1145 = vmatpush1.msra.mxu0 0.0
    %1146 = vmatprep.subr.mxu0 0.0
    %1147 = vmatpush1.msra.mxu0 0.0
    %1148 = vmatprep.subr.mxu0 0.0
    %1149 = vmatpush1.msra.mxu0 0.0
    %1150 = vmatprep.subr.mxu0 0.0
    %1151 = vmatpush1.msra.mxu0 0.0
    %1152 = vmatprep.subr.mxu0 0.0
    %1153 = vmatpush1.msra.mxu0 0.0
    %1154 = vmatprep.subr.mxu0 0.0
    %1155 = vmatpush1.msra.mxu0 0.0
    %1156 = vmatprep.subr.mxu0 0.0
    %1157 = vmatpush1.msra.mxu0 0.0
    %1158 = vmatprep.subr.mxu0 0.0
    %1159 = vmatpush1.msra.mxu0 0.0
    %1160 = vmatprep.subr.mxu0 0.0
    %1161 = vmatpush1.msra.mxu0 0.0
    %1162 = vmatprep.subr.mxu0 0.0
    %1163 = vmatpush1.msra.mxu0 0.0
    %1164 = vmatprep.subr.mxu0 0.0
    %1165 = vmatpush1.msra.mxu0 0.0
    %1166 = vmatprep.subr.mxu0 0.0
    %1167 = vmatpush1.msra.mxu0 0.0
    %1168 = vmatprep.subr.mxu0 0.0
    %1169 = vmatpush1.msra.mxu0 0.0
    %1170 = vmatprep.mubr.f32.mxu0 0.0
    %1171 = vmatmul.mubr.f32.gmra.mrb[0].mxu0 %v950
    %v1172 = vpop.f32.mrb[0].mxu0
    %v1173 = vadd.f32 %v1098, %v1172
    %v1174 = vpop.f32.mrb[0].mxu0
    %1175 = vmatprep.mubr.f32.mxu0 0.0
    %1176 = vmatmul.mubr.f32.gmra.mrb[0].mxu0 %v955
    %v1177 = vpop.f32.mrb[0].mxu0
    %v1178 = vadd.f32 %v1103, %v1177
    %v1179 = vpop.f32.mrb[0].mxu0
    %1180 = vdwg.mxu0
    %1181 = vst.msk [vmem:[#allocation2] sm:$0xff] %vm275, %v1173
    %1182 = vst.msk [vmem:[#allocation2 + $0x8] sm:$0xff] %vm275, %v1178
    // Predicated region
    $region26: #{sparse_moe.1} parent=1 // pred_check
      _
    $region27: #{sparse_moe.1} parent=1 // pred_check_branch
      %1184 = sbr.rel (0) target = $region29
    $region28: #{sparse_moe.1} parent=1 // pred_region
      %s1186 = ssub.s32 256, 256
      %1187 = vsyncadd [#allocation3], %s1186
      %s1188 = sshll.u32 [#allocation2], 4
      %s1189 = int_to_ptr.vmem [resolvable:$true] %s1188
      %1194 = dma.vmem_to_hbm [thread:$0]  %s1189, 256, %s6, [#allocation3], 128, 128, 8
    $region29: #{sparse_moe.1} parent=1 // pred_fallthru
      _
    // Predicated region
    $region30: #{sparse_moe.1} parent=1 // pred_check
      _
    $region31: #{sparse_moe.1} parent=1 // pred_check_branch
      %1196 = sbr.rel (0) target = $region33
    $region32: #{sparse_moe.1} parent=1 // pred_region
      %1197 = dma.done [#allocation3], 256
    $region33: #{sparse_moe.1} parent=1 // pred_fallthru
      _
    %1198 = vsyncpa [#allocation3], 1

</llo_original>
